<compile_context>
chip_gen: v7x
topology: tpu7x:2x2x1
jax: 0.10.0
libtpu: 0.0.40
codegen_flags: <defaults>
</compile_context>

<pallas_src>
import math

import jax
import jax.numpy as jnp
from jax.experimental import pallas as pl
from jax.experimental.pallas import tpu as pltpu


_LANES = 128
# Leave headroom under v7x's 64 MiB physical VMEM (v5e/v6e have 128 MiB).
_VMEM_BUDGET = 44 * 1024 * 1024


def _round_up(x, m):
    return ((x + m - 1) // m) * m


# ---------------------------------------------------------------------------
# Kernel: one grid step == one block of TM tokens.
#   x_ref : (TM, I)       activation tile (native dtype, streamed)
#   w_ref : (I, OUT_pad)  resident zero-padded weight, W.T layout
#   b_ref : (1, OUT_pad)  resident zero-padded bias (f32)
#   o_ref : (TM, OUT_pad) lane-dense f32 output slab
# ---------------------------------------------------------------------------
def _output_kernel(x_ref, w_ref, b_ref, o_ref):
    # Dropout is identity in eval mode (training-mode TODO above).
    y = jnp.dot(x_ref[...], w_ref[...], preferred_element_type=jnp.float32)
    o_ref[...] = (y + b_ref[...]).astype(o_ref.dtype)


def ilp_transformer_output(hidden_states, input_tensor, weight, bias,
                           *, block_tokens=None):
    """Forward of ILPTransformerOutput: dense(dropout(hidden_states)).

    hidden_states : (B, S, I)
    input_tensor  : unused (kept for signature parity with the PyTorch module)
    weight        : (OUT, I)  -- torch nn.Linear layout
    bias          : (OUT,)
    returns       : (B, S, OUT) float32
    """
    del input_tensor  # the reference forward() never uses it

    B, S, I = hidden_states.shape
    OUT = weight.shape[0]
    N = B * S

    x = hidden_states.reshape(N, I)            # free view, native dtype
    itemsize = x.dtype.itemsize
    OUT_pad = _round_up(OUT, _LANES)           # 2 -> 128 lane-dense output

    # Token tile: multiple of the sublane packing for this dtype, big enough
    # to amortize the ~0.35us per-grid-step overhead, small enough that the
    # double-buffered working set fits the v7x VMEM budget.
    tm_align = max(8, 32 // itemsize)          # f32 -> 8, bf16 -> 16, i8 -> 32
    if block_tokens is None:
        block_tokens = 1024 if itemsize <= 2 else 512
    TM = max(tm_align, min(block_tokens, _round_up(N, tm_align)))
    TM = _round_up(TM, tm_align)

    w_itemsize = itemsize                      # weight streamed in x's dtype

    def _footprint(tm):
        x_b = 2 * tm * I * itemsize            # double-buffered x tile
        w_b = 2 * I * OUT_pad * w_itemsize     # resident weight (2 bufs alloc'd)
        b_b = 2 * OUT_pad * 4
        o_b = 2 * tm * OUT_pad * 4
        return x_b + w_b + b_b + o_b

    while TM > tm_align and _footprint(TM) > _VMEM_BUDGET:
        TM = _round_up(max(TM // 2, tm_align), tm_align)

    # Tiny, one-off pads: weight (W.T with zero-padded output lanes) and bias.
    # Zero-padded weight columns keep padded output columns exactly zero.
    w = jnp.pad(weight.astype(x.dtype).T, ((0, 0), (0, OUT_pad - OUT)))
    b = jnp.pad(bias.astype(jnp.float32), (0, OUT_pad - OUT)).reshape(1, OUT_pad)

    grid = (pl.cdiv(N, TM),)

    grid_spec = pltpu.PrefetchScalarGridSpec(
        num_scalar_prefetch=0,
        grid=grid,
        in_specs=[
            pl.BlockSpec((TM, I), lambda i: (i, 0)),        # streamed x tile
            pl.BlockSpec((I, OUT_pad), lambda i: (0, 0)),   # resident weight
            pl.BlockSpec((1, OUT_pad), lambda i: (0, 0)),   # resident bias
        ],
        out_specs=pl.BlockSpec((TM, OUT_pad), lambda i: (i, 0)),
    )

    cost = pl.CostEstimate(
        flops=2 * N * I * OUT_pad,
        transcendentals=0,
        bytes_accessed=(N * I * itemsize              # x read (dominant)
                        + I * OUT_pad * w_itemsize    # weight read (once)
                        + N * OUT_pad * 4),           # output slab write
    )

    vmem_limit = int(min(max(_footprint(TM) * 5 // 4, 16 * 1024 * 1024),
                         56 * 1024 * 1024))

    out_pad = pl.pallas_call(
        _output_kernel,
        out_shape=jax.ShapeDtypeStruct((N, OUT_pad), jnp.float32),
        grid_spec=grid_spec,
        compiler_params=pltpu.CompilerParams(
            dimension_semantics=("parallel",),   # token blocks are independent
            vmem_limit_bytes=vmem_limit),
        cost_estimate=cost,
    )(x, w, b)

    # Fusable lax.slice of the 2 real output columns; (N,2)->(B,S,2) is free.
    return out_pad[:, :OUT].reshape(B, S, OUT)


# ---------------------------------------------------------------------------
# Pure-JAX reference (for a sanity check).
# ---------------------------------------------------------------------------
def _reference(hidden_states, weight, bias):
    return (jnp.einsum("bsi,oi->bso",
                       hidden_states.astype(jnp.float32),
                       weight.astype(jnp.float32),
                       precision=jax.lax.Precision.HIGHEST)
            + bias.astype(jnp.float32))


if __name__ == "__main__":
    # Small synthetic "config"
    intermediate_size = 32
    out_features = 2           # fixed by the module: nn.Linear(intermediate_size, 2)
    B, S = 2, 8

    key = jax.random.PRNGKey(0)
    k_x, k_in, k_w, k_b = jax.random.split(key, 4)

    hidden_states = jax.random.normal(k_x, (B, S, intermediate_size), jnp.float32)
    input_tensor = jax.random.normal(k_in, (B, S, intermediate_size), jnp.float32)

    # nn.Linear default init: U(-1/sqrt(fan_in), 1/sqrt(fan_in)).
    bound = 1.0 / math.sqrt(intermediate_size)
    weight = jax.random.uniform(k_w, (out_features, intermediate_size),
                                jnp.float32, -bound, bound)
    bias = jax.random.uniform(k_b, (out_features,), jnp.float32, -bound, bound)

    out = ilp_transformer_output(hidden_states, input_tensor, weight, bias)
    out = jax.block_until_ready(out)

    ref = _reference(hidden_states, weight, bias)
    assert out.shape == (B, S, out_features)
    # Loose-ish tolerance: MXU matmul precision for f32 operands may differ
    # slightly from the HIGHEST-precision XLA reference.
    assert jnp.allclose(out, ref, atol=2e-2, rtol=2e-2)

    print("KERNEL_OK")
</pallas_src>

<mosaic_0001>
module attributes {stable_mosaic.version = 11 : i64} {
  func.func @_output_kernel(%arg0: i32, %arg1: memref<16x32xf32, #tpu.memory_space<vmem>>, %arg2: memref<32x128xf32, #tpu.memory_space<vmem>>, %arg3: memref<1x128xf32, #tpu.memory_space<vmem>>, %arg4: memref<16x128xf32, #tpu.memory_space<vmem>>) attributes {dimension_semantics = [#tpu.dimension_semantics<parallel>], iteration_bounds = array<i64: 1>, scalar_prefetch = 0 : i64, scratch_operands = 0 : i64, tpu.core_type = #tpu.core_type<tc>, window_params = [{transform_indices = @transform_0, window_bounds = array<i64: 16, 32>}, {pipeline_mode = #tpu.pipeline_mode<synchronous>, transform_indices = @transform_1, window_bounds = array<i64: 32, 128>}, {pipeline_mode = #tpu.pipeline_mode<synchronous>, transform_indices = @transform_2, window_bounds = array<i64: 1, 128>}, {transform_indices = @transform_3, window_bounds = array<i64: 16, 128>}]} {
    %c0 = arith.constant 0 : index
    %c0_0 = arith.constant 0 : index
    %0 = vector.load %arg1[%c0, %c0_0] : memref<16x32xf32, #tpu.memory_space<vmem>>, vector<16x32xf32>
    %c0_1 = arith.constant 0 : index
    %c0_2 = arith.constant 0 : index
    %1 = vector.load %arg2[%c0_1, %c0_2] : memref<32x128xf32, #tpu.memory_space<vmem>>, vector<32x128xf32>
    %cst = arith.constant dense<0.000000e+00> : vector<16x128xf32>
    %2 = tpu.matmul %0, %1, %cst {dimension_numbers = #tpu.dot_dimension_numbers<[1], [0], [0], [1], [0, 0, 1, 1], [], []>} : vector<16x32xf32>, vector<32x128xf32>, vector<16x128xf32> -> vector<16x128xf32>
    %c0_3 = arith.constant 0 : index
    %c0_4 = arith.constant 0 : index
    %3 = vector.load %arg3[%c0_3, %c0_4] : memref<1x128xf32, #tpu.memory_space<vmem>>, vector<1x128xf32>
    %4 = vector.broadcast %3 : vector<1x128xf32> to vector<16x128xf32>
    %5 = arith.addf %2, %4 : vector<16x128xf32>
    %c0_5 = arith.constant 0 : index
    %c0_6 = arith.constant 0 : index
    %6 = vector.load %arg4[%c0_5, %c0_6] : memref<16x128xf32, #tpu.memory_space<vmem>>, vector<16x128xf32>
    tpu.vector_store %arg4[%c0_5, %c0_6], %5 {strides = array<i32>} : memref<16x128xf32, #tpu.memory_space<vmem>>, vector<16x128xf32>,
    return
  }
  func.func @transform_0(%arg0: i32) -> (i32, i32) {
    %c0_i32 = arith.constant 0 : i32
    %c0_i32_0 = arith.constant 0 : i32
    return %arg0, %c0_i32 : i32, i32
  }
  func.func @transform_1(%arg0: i32) -> (i32, i32) {
    %c0_i32 = arith.constant 0 : i32
    %c0_i32_0 = arith.constant 0 : i32
    %c0_i32_1 = arith.constant 0 : i32
    return %c0_i32, %c0_i32_0 : i32, i32
  }
  func.func @transform_2(%arg0: i32) -> (i32, i32) {
    %c0_i32 = arith.constant 0 : i32
    %c0_i32_0 = arith.constant 0 : i32
    %c0_i32_1 = arith.constant 0 : i32
    return %c0_i32, %c0_i32_0 : i32, i32
  }
  func.func @transform_3(%arg0: i32) -> (i32, i32) {
    %c0_i32 = arith.constant 0 : i32
    %c0_i32_0 = arith.constant 0 : i32
    return %arg0, %c0_i32 : i32, i32
  }
}

</mosaic_0001>

<llo_original>
// kernel: tpu_custom_call.1
$region0: #{tpu_custom_call.1}
  #allocation0 [shape = 'u32[]', space=smem, size = 0x4, offset = 0x4, fixed_abs, tag = 'smem constant byte address 0x4 - core index']
  #allocation1 [shape = 'u32[144,128]{1,0:T(1,128)}', space=vmem, size = 0x12000, scoped, tag = 'internal scratch']
  %s0 = inlined_call_operand.hbm [shape: f32[16,32], index: 0, kind: input, shape index: {}]
  %s1 = inlined_call_operand.hbm [shape: f32[32,128], index: 1, kind: input, shape index: {}]
  %s2 = inlined_call_operand.vmem [shape: f32[1,128], index: 2, kind: input, shape index: {}]
  %s3 = inlined_call_operand.hbm [shape: f32[16,128], index: 3, kind: output, shape index: {}]
  %s4 = sld [smem:[#allocation0]]
  $region30: #{tpu_custom_call.1} parent=0
    _
  %s6 = ssub.s32 1, %s4
  %s7 = scalar_select 0, %s6, %s4
  $region1: #{tpu_custom_call.1} parent=0
    #allocation2 [shape = 'u8[8192]{0}', space=vmem, size = 0x2000, scoped, tag = 'input window, operand 0, single buffered']
    #allocation3 [shape = 's32[1]{0}', space=sflag, size = 0x4, scoped, tag = 'scoped memory for tpu_custom_call.1']
    #allocation4 [shape = 's32[1]{0}', space=sflag, size = 0x4, scoped, tag = 'scoped memory for tpu_custom_call.1']
    #allocation5 [shape = 'u8[16384]{0}', space=vmem, size = 0x4000, scoped, tag = 'input window, operand 1, single buffered']
    #allocation6 [shape = 's32[1]{0}', space=sflag, size = 0x4, scoped, tag = 'scoped memory for tpu_custom_call.1']
    #allocation7 [shape = 'u8[8192]{0}', space=vmem, size = 0x2000, scoped, tag = 'output window, operand 0, single buffered']
    %8 = vsyncpa [#allocation3], 0
    %9 = vsyncpa [#allocation6], 0
    %10 = vsyncpa [#allocation4], 0
    // Predicated region
    $region2: #{tpu_custom_call.1} parent=1 // pred_check
      _
    $region3: #{tpu_custom_call.1} parent=1 // pred_check_branch
      %12 = sbr.rel (0) target = $region5
    $region4: #{tpu_custom_call.1} parent=1 // pred_region
      %s14 = ssub.s32 256, 256
      %15 = vsyncadd [#allocation3], %s14
      %s16 = sshll.u32 [#allocation2], 4
      %s17 = int_to_ptr.vmem [resolvable:$true] %s16
      %22 = dma.hbm_to_vmem [thread:$0]  %s0, 256, %s17, [#allocation3], 128, 128, 8
    $region5: #{tpu_custom_call.1} parent=1 // pred_fallthru
      _
    // Predicated region
    $region6: #{tpu_custom_call.1} parent=1 // pred_check
      _
    $region7: #{tpu_custom_call.1} parent=1 // pred_check_branch
      %24 = sbr.rel (0) target = $region9
    $region8: #{tpu_custom_call.1} parent=1 // pred_region
      %s26 = ssub.s32 512, 512
      %27 = vsyncadd [#allocation6], %s26
      %s28 = sshll.u32 [#allocation5], 4
      %s29 = int_to_ptr.vmem [resolvable:$true] %s28
      %34 = dma.hbm_to_vmem [thread:$0]  %s1, 512, %s29, [#allocation6], 128, 128, 8
    $region9: #{tpu_custom_call.1} parent=1 // pred_fallthru
      _
    // Predicated region
    $region10: #{tpu_custom_call.1} parent=1 // pred_check
      _
    $region11: #{tpu_custom_call.1} parent=1 // pred_check_branch
      %36 = sbr.rel (0) target = $region13
    $region12: #{tpu_custom_call.1} parent=1 // pred_region
      _
    $region13: #{tpu_custom_call.1} parent=1 // pred_fallthru
      _
    // Predicated region
    $region14: #{tpu_custom_call.1} parent=1 // pred_check
      _
    $region15: #{tpu_custom_call.1} parent=1 // pred_check_branch
      %38 = sbr.rel (0) target = $region17
    $region16: #{tpu_custom_call.1} parent=1 // pred_region
      %39 = dma.done [#allocation3], 256
    $region17: #{tpu_custom_call.1} parent=1 // pred_fallthru
      _
    // Predicated region
    $region18: #{tpu_custom_call.1} parent=1 // pred_check
      _
    $region19: #{tpu_custom_call.1} parent=1 // pred_check_branch
      %41 = sbr.rel (0) target = $region21
    $region20: #{tpu_custom_call.1} parent=1 // pred_region
      %42 = dma.done [#allocation6], 512
    $region21: #{tpu_custom_call.1} parent=1 // pred_fallthru
      _
    %v43 = vld [vmem:[#allocation2] sm:$0xff]
    %v44 = vld [vmem:[#allocation2 + $0x8] sm:$0xff]
    %v45 = vld [vmem:[#allocation5] sm:$0xff]
    %v46 = vld [vmem:[#allocation5 + $0x8] sm:$0xff]
    %v47 = vld [vmem:[#allocation5 + $0x10] sm:$0xff]
    %v48 = vld [vmem:[#allocation5 + $0x18] sm:$0xff]
    %v49 = vld [vmem:[%s2] sm:$0x1]
    %v51 = vlaneseq
    %v52 = vshrl.u32 %v51, 7
    %v53 = vsub.s32 0, %v52
    %v54 = vrot.slane %v49, %v53
    %vm56 = vcmask 261120
    %v58 = vsel %vm56, %v43, 0
    %v61 = vsel %vm56, %v44, 0
    %63 = vmatprep.subr.mxu0 0.0
    %64 = vmatpush1.msra.mxu0 %v45
    %65 = vmatprep.subr.mxu0 0.0
    %66 = vmatpush1.msra.mxu0 %v46
    %67 = vmatprep.subr.mxu0 0.0
    %68 = vmatpush1.msra.mxu0 %v47
    %69 = vmatprep.subr.mxu0 0.0
    %70 = vmatpush1.msra.mxu0 %v48
    %71 = vmatprep.subr.mxu0 0.0
    %72 = vmatpush1.msra.mxu0 0.0
    %73 = vmatprep.subr.mxu0 0.0
    %74 = vmatpush1.msra.mxu0 0.0
    %75 = vmatprep.subr.mxu0 0.0
    %76 = vmatpush1.msra.mxu0 0.0
    %77 = vmatprep.subr.mxu0 0.0
    %78 = vmatpush1.msra.mxu0 0.0
    %79 = vmatprep.subr.mxu0 0.0
    %80 = vmatpush1.msra.mxu0 0.0
    %81 = vmatprep.subr.mxu0 0.0
    %82 = vmatpush1.msra.mxu0 0.0
    %83 = vmatprep.subr.mxu0 0.0
    %84 = vmatpush1.msra.mxu0 0.0
    %85 = vmatprep.subr.mxu0 0.0
    %86 = vmatpush1.msra.mxu0 0.0
    %87 = vmatprep.subr.mxu0 0.0
    %88 = vmatpush1.msra.mxu0 0.0
    %89 = vmatprep.subr.mxu0 0.0
    %90 = vmatpush1.msra.mxu0 0.0
    %91 = vmatprep.subr.mxu0 0.0
    %92 = vmatpush1.msra.mxu0 0.0
    %93 = vmatprep.subr.mxu0 0.0
    %94 = vmatpush1.msra.mxu0 0.0
    %95 = vmatprep.subr.mxu0 0.0
    %96 = vmatpush1.msra.mxu0 0.0
    %97 = vmatprep.subr.mxu0 0.0
    %98 = vmatpush1.msra.mxu0 0.0
    %99 = vmatprep.subr.mxu0 0.0
    %100 = vmatpush1.msra.mxu0 0.0
    %101 = vmatprep.subr.mxu0 0.0
    %102 = vmatpush1.msra.mxu0 0.0
    %103 = vmatprep.subr.mxu0 0.0
    %104 = vmatpush1.msra.mxu0 0.0
    %105 = vmatprep.subr.mxu0 0.0
    %106 = vmatpush1.msra.mxu0 0.0
    %107 = vmatprep.subr.mxu0 0.0
    %108 = vmatpush1.msra.mxu0 0.0
    %109 = vmatprep.subr.mxu0 0.0
    %110 = vmatpush1.msra.mxu0 0.0
    %111 = vmatprep.subr.mxu0 0.0
    %112 = vmatpush1.msra.mxu0 0.0
    %113 = vmatprep.subr.mxu0 0.0
    %114 = vmatpush1.msra.mxu0 0.0
    %115 = vmatprep.subr.mxu0 0.0
    %116 = vmatpush1.msra.mxu0 0.0
    %117 = vmatprep.subr.mxu0 0.0
    %118 = vmatpush1.msra.mxu0 0.0
    %119 = vmatprep.subr.mxu0 0.0
    %120 = vmatpush1.msra.mxu0 0.0
    %121 = vmatprep.subr.mxu0 0.0
    %122 = vmatpush1.msra.mxu0 0.0
    %123 = vmatprep.subr.mxu0 0.0
    %124 = vmatpush1.msra.mxu0 0.0
    %125 = vmatprep.subr.mxu0 0.0
    %126 = vmatpush1.msra.mxu0 0.0
    %127 = vmatprep.mubr.f32.mxu0 0.0
    %128 = vmatmul.mubr.f32.gmra.mrb[0].mxu0 %v58
    %v129 = vpop.f32.mrb[0].mxu0
    %v130 = vadd.f32 %v54, %v129
    %v131 = vpop.f32.mrb[0].mxu0
    %132 = vmatprep.mubr.f32.mxu0 0.0
    %133 = vmatmul.mubr.f32.gmra.mrb[0].mxu0 %v61
    %v134 = vpop.f32.mrb[0].mxu0
    %v135 = vadd.f32 %v54, %v134
    %v136 = vpop.f32.mrb[0].mxu0
    %137 = vdwg.mxu0
    %138 = vst [vmem:[#allocation7] sm:$0xff] %v130
    %139 = vst [vmem:[#allocation7 + $0x8] sm:$0xff] %v135
    // Predicated region
    $region22: #{tpu_custom_call.1} parent=1 // pred_check
      _
    $region23: #{tpu_custom_call.1} parent=1 // pred_check_branch
      %141 = sbr.rel (0) target = $region25
    $region24: #{tpu_custom_call.1} parent=1 // pred_region
      %s143 = ssub.s32 256, 256
      %144 = vsyncadd [#allocation4], %s143
      %s145 = sshll.u32 [#allocation7], 4
      %s146 = int_to_ptr.vmem [resolvable:$true] %s145
      %151 = dma.vmem_to_hbm [thread:$0]  %s146, 256, %s3, [#allocation4], 128, 128, 8
    $region25: #{tpu_custom_call.1} parent=1 // pred_fallthru
      _
    // Predicated region
    $region26: #{tpu_custom_call.1} parent=1 // pred_check
      _
    $region27: #{tpu_custom_call.1} parent=1 // pred_check_branch
      %153 = sbr.rel (0) target = $region29
    $region28: #{tpu_custom_call.1} parent=1 // pred_region
      %154 = dma.done [#allocation4], 256
    $region29: #{tpu_custom_call.1} parent=1 // pred_fallthru
      _
    %155 = vsyncpa [#allocation3], 1
    %156 = vsyncpa [#allocation6], 1
    %157 = vsyncpa [#allocation4], 1

</llo_original>
